<compile_context>
chip_gen: v7x
topology: tpu7x:2x2x1
jax: 0.10.0
libtpu: 0.0.40
codegen_flags: <defaults>
</compile_context>

<pallas_src>
import functools
import math

import jax
import jax.numpy as jnp
from jax.experimental import pallas as pl
from jax.experimental.pallas import tpu as pltpu

_LANE = 128
_SUBLANE_F32 = 8
_TILE_TARGET_F32_BYTES = 2 * 1024 * 1024     # ~2 MiB of f32 compute per tile
_VMEM_LIMIT_BYTES = 48 * 1024 * 1024         # safe on v5e/v6e (128 MiB) and v7x (64 MiB)


def _round_up(x, m):
    return ((x + m - 1) // m) * m


def _round_down(x, m):
    return (x // m) * m


def _pick_tile_rows(rows, width, dtype):
    """Pick a VMEM-sized row-tile (multiple of the sublane packing)."""
    itemsize = jnp.dtype(dtype).itemsize
    # >=8 rows for f32, >=16 for bf16, >=32 for int8/fp8 I/O.
    sublane = max(_SUBLANE_F32, 32 // max(int(itemsize), 1))
    target_rows = _TILE_TARGET_F32_BYTES // (max(width, _LANE) * 4)
    target_rows = max(sublane, _round_down(target_rows, sublane))
    rows_cap = _round_up(rows, sublane)          # don't exceed (padded) problem
    return min(target_rows, rows_cap)


def _ln_rows_kernel(x_ref, gamma_ref, beta_ref, o_ref, *, eps, n_features):
    """Standard path: features live on the lane axis (F >= 128 or F !| 128)."""
    x = x_ref[...].astype(jnp.float32)                       # (tile_rows, F)
    # Fused one-pass moments off a single load of x.
    sum_x = jnp.sum(x, axis=-1, keepdims=True)
    sum_xx = jnp.sum(x * x, axis=-1, keepdims=True)
    mean = sum_x * jnp.float32(1.0 / n_features)
    # Unbiased: sum((x-mean)^2) == sum_xx - sum_x*mean ; divide by N-1.
    var = (sum_xx - sum_x * mean) * jnp.float32(1.0 / (n_features - 1))
    var = jnp.maximum(var, jnp.float32(0.0))                 # guard cancellation
    std = jnp.sqrt(var)
    inv = pl.reciprocal(std + jnp.float32(eps), approx=True)  # (tile_rows,1) on EUP
    out = gamma_ref[...] * ((x - mean) * inv) + beta_ref[...]
    o_ref[...] = out.astype(o_ref.dtype)


def _ln_packed_kernel(x_ref, m_ref, gamma_ref, beta_ref, o_ref, *, eps, n_features):
    """Lane-dense path: G = 128/F logical rows packed per 128-lane row.

    m_ref is a (128,128) block-diagonal ones matrix; x @ m sums each F-lane
    segment and broadcasts the sum back across that segment (MXU, overlaps
    with the DMA stream of this mem-bound kernel).
    """
    x = x_ref[...].astype(jnp.float32)                        # (tile_rows, 128)
    m = m_ref[...]                                            # (128, 128) f32 0/1
    sum_x = jnp.dot(x, m, preferred_element_type=jnp.float32)
    sum_xx = jnp.dot(x * x, m, preferred_element_type=jnp.float32)
    mean = sum_x * jnp.float32(1.0 / n_features)
    var = (sum_xx - sum_x * mean) * jnp.float32(1.0 / (n_features - 1))
    var = jnp.maximum(var, jnp.float32(0.0))
    std = jnp.sqrt(var)
    inv = pl.reciprocal(std + jnp.float32(eps), approx=True)
    out = gamma_ref[...] * ((x - mean) * inv) + beta_ref[...]
    o_ref[...] = out.astype(o_ref.dtype)


def layer_norm(x, a_2, b_2, eps=1e-6):
    """LayerNorm over the last axis of x, matching the torch module."""
    orig_shape = x.shape
    features = int(orig_shape[-1])
    if features < 2:
        raise ValueError("features must be >= 2 (unbiased std divides by N-1)")
    rows = math.prod(orig_shape[:-1]) if len(orig_shape) > 1 else 1

    x2 = x.reshape(rows, features)
    gamma = jnp.asarray(a_2, jnp.float32).reshape(1, features)
    beta = jnp.asarray(b_2, jnp.float32).reshape(1, features)
    out_dtype = x.dtype
    compiler_params = pltpu.CompilerParams(
        dimension_semantics=("parallel",),
        vmem_limit_bytes=_VMEM_LIMIT_BYTES,
    )

    if features < _LANE and _LANE % features == 0:
        # ---------------- lane-dense packed path ----------------
        group = _LANE // features                       # logical rows per packed row
        rows_g = _round_up(rows, group)
        if rows_g != rows:
            x2 = jnp.pad(x2, ((0, rows_g - rows), (0, 0)))
        rows_packed = rows_g // group
        xp = x2.reshape(rows_packed, _LANE)

        tile_rows = _pick_tile_rows(rows_packed, _LANE, out_dtype)
        rows_padded = _round_up(rows_packed, tile_rows)
        if rows_padded != rows_packed:
            xp = jnp.pad(xp, ((0, rows_padded - rows_packed), (0, 0)))

        # Block-diagonal ones: segmented sum + broadcast in one matmul.
        seg = jnp.arange(_LANE, dtype=jnp.int32) // features
        mat = (seg[:, None] == seg[None, :]).astype(jnp.float32)
        gamma_p = jnp.tile(gamma, (1, group))
        beta_p = jnp.tile(beta, (1, group))

        kernel = functools.partial(
            _ln_packed_kernel, eps=float(eps), n_features=features
        )
        out = pl.pallas_call(
            kernel,
            out_shape=jax.ShapeDtypeStruct((rows_padded, _LANE), out_dtype),
            grid=(rows_padded // tile_rows,),
            in_specs=[
                pl.BlockSpec((tile_rows, _LANE), lambda i: (i, 0)),
                pl.BlockSpec((_LANE, _LANE), lambda i: (0, 0)),   # resident
                pl.BlockSpec((1, _LANE), lambda i: (0, 0)),       # resident
                pl.BlockSpec((1, _LANE), lambda i: (0, 0)),       # resident
            ],
            out_specs=pl.BlockSpec((tile_rows, _LANE), lambda i: (i, 0)),
            compiler_params=compiler_params,
        )(xp, mat, gamma_p, beta_p)

        out = out[:rows_packed].reshape(rows_g, features)[:rows]
        return out.reshape(orig_shape)

    # ---------------- standard path (features on lanes) ----------------
    tile_rows = _pick_tile_rows(rows, features, out_dtype)
    rows_padded = _round_up(rows, tile_rows)
    if rows_padded != rows:
        x2 = jnp.pad(x2, ((0, rows_padded - rows), (0, 0)))

    kernel = functools.partial(_ln_rows_kernel, eps=float(eps), n_features=features)
    out = pl.pallas_call(
        kernel,
        out_shape=jax.ShapeDtypeStruct((rows_padded, features), out_dtype),
        grid=(rows_padded // tile_rows,),
        in_specs=[
            pl.BlockSpec((tile_rows, features), lambda i: (i, 0)),
            pl.BlockSpec((1, features), lambda i: (0, 0)),
            pl.BlockSpec((1, features), lambda i: (0, 0)),
        ],
        out_specs=pl.BlockSpec((tile_rows, features), lambda i: (i, 0)),
        compiler_params=compiler_params,
    )(x2, gamma, beta)

    return out[:rows].reshape(orig_shape)


def _reference_layer_norm(x, a_2, b_2, eps=1e-6):
    # Pure-JAX reference matching the torch module (unbiased std, eps on std).
    x = x.astype(jnp.float32)
    mean = jnp.mean(x, axis=-1, keepdims=True)
    var = jnp.sum((x - mean) ** 2, axis=-1, keepdims=True) / (x.shape[-1] - 1)
    std = jnp.sqrt(var)
    return a_2 * (x - mean) / (std + eps) + b_2


if __name__ == "__main__":
    key = jax.random.PRNGKey(0)
    batch, seq, hidden = 2, 8, 32  # features = hidden (exercises the packed path)

    x = jax.random.normal(key, (batch, seq, hidden), dtype=jnp.float32)
    # nn.Parameter(torch.ones(features)) / torch.zeros(features)
    a_2 = jnp.ones((hidden,), dtype=jnp.float32)
    b_2 = jnp.zeros((hidden,), dtype=jnp.float32)

    out = layer_norm(x, a_2, b_2, eps=1e-6)
    out = jax.block_until_ready(out)

    ref = _reference_layer_norm(x, a_2, b_2, eps=1e-6)
    assert out.shape == x.shape
    # Tolerance accounts for the approx EUP reciprocal and the default-precision
    # (bf16-pass) MXU segmented-sum in the lane-packed path (~1e-3 rel error).
    assert jnp.allclose(out, ref, atol=5e-3, rtol=1e-2), float(
        jnp.max(jnp.abs(out - ref))
    )

    print("KERNEL_OK")
</pallas_src>

<mosaic_0001>
module attributes {stable_mosaic.version = 11 : i64} {
  func.func @_ln_packed_kernel(%arg0: i32, %arg1: memref<8x128xf32, #tpu.memory_space<vmem>>, %arg2: memref<128x128xf32, #tpu.memory_space<vmem>>, %arg3: memref<1x128xf32, #tpu.memory_space<vmem>>, %arg4: memref<1x128xf32, #tpu.memory_space<vmem>>, %arg5: memref<8x128xf32, #tpu.memory_space<vmem>>) attributes {dimension_semantics = [#tpu.dimension_semantics<parallel>], iteration_bounds = array<i64: 1>, scalar_prefetch = 0 : i64, scratch_operands = 0 : i64, tpu.core_type = #tpu.core_type<tc>, window_params = [{transform_indices = @transform_0, window_bounds = array<i64: 8, 128>}, {pipeline_mode = #tpu.pipeline_mode<synchronous>, transform_indices = @transform_1, window_bounds = array<i64: 128, 128>}, {pipeline_mode = #tpu.pipeline_mode<synchronous>, transform_indices = @transform_2, window_bounds = array<i64: 1, 128>}, {pipeline_mode = #tpu.pipeline_mode<synchronous>, transform_indices = @transform_3, window_bounds = array<i64: 1, 128>}, {transform_indices = @transform_4, window_bounds = array<i64: 8, 128>}]} {
    %c0 = arith.constant 0 : index
    %c0_0 = arith.constant 0 : index
    %0 = vector.load %arg1[%c0, %c0_0] : memref<8x128xf32, #tpu.memory_space<vmem>>, vector<8x128xf32>
    %c0_1 = arith.constant 0 : index
    %c0_2 = arith.constant 0 : index
    %1 = vector.load %arg2[%c0_1, %c0_2] : memref<128x128xf32, #tpu.memory_space<vmem>>, vector<128x128xf32>
    %cst = arith.constant dense<0.000000e+00> : vector<8x128xf32>
    %2 = tpu.matmul %0, %1, %cst {dimension_numbers = #tpu.dot_dimension_numbers<[1], [0], [0], [1], [0, 0, 1, 1], [], []>} : vector<8x128xf32>, vector<128x128xf32>, vector<8x128xf32> -> vector<8x128xf32>
    %3 = arith.mulf %0, %0 : vector<8x128xf32>
    %cst_3 = arith.constant dense<0.000000e+00> : vector<8x128xf32>
    %4 = tpu.matmul %3, %1, %cst_3 {dimension_numbers = #tpu.dot_dimension_numbers<[1], [0], [0], [1], [0, 0, 1, 1], [], []>} : vector<8x128xf32>, vector<128x128xf32>, vector<8x128xf32> -> vector<8x128xf32>
    %cst_4 = arith.constant 3.125000e-02 : f32
    %5 = vector.broadcast %cst_4 : f32 to vector<8x128xf32>
    %6 = arith.mulf %2, %5 : vector<8x128xf32>
    %7 = arith.mulf %2, %6 : vector<8x128xf32>
    %8 = arith.subf %4, %7 : vector<8x128xf32>
    %cst_5 = arith.constant 0.0322580636 : f32
    %9 = vector.broadcast %cst_5 : f32 to vector<8x128xf32>
    %10 = arith.mulf %8, %9 : vector<8x128xf32>
    %cst_6 = arith.constant 0.000000e+00 : f32
    %11 = vector.broadcast %cst_6 : f32 to vector<8x128xf32>
    %12 = arith.maximumf %10, %11 : vector<8x128xf32>
    %13 = math.sqrt %12 : vector<8x128xf32>
    %cst_7 = arith.constant 9.99999997E-7 : f32
    %14 = vector.broadcast %cst_7 : f32 to vector<8x128xf32>
    %15 = arith.addf %13, %14 : vector<8x128xf32>
    %16 = tpu.reciprocal %15 {approx = true} : vector<8x128xf32> -> vector<8x128xf32>
    %c0_8 = arith.constant 0 : index
    %c0_9 = arith.constant 0 : index
    %17 = vector.load %arg3[%c0_8, %c0_9] : memref<1x128xf32, #tpu.memory_space<vmem>>, vector<1x128xf32>
    %18 = arith.subf %0, %6 : vector<8x128xf32>
    %19 = arith.mulf %18, %16 : vector<8x128xf32>
    %20 = vector.broadcast %17 : vector<1x128xf32> to vector<8x128xf32>
    %21 = arith.mulf %20, %19 : vector<8x128xf32>
    %c0_10 = arith.constant 0 : index
    %c0_11 = arith.constant 0 : index
    %22 = vector.load %arg4[%c0_10, %c0_11] : memref<1x128xf32, #tpu.memory_space<vmem>>, vector<1x128xf32>
    %23 = vector.broadcast %22 : vector<1x128xf32> to vector<8x128xf32>
    %24 = arith.addf %21, %23 : vector<8x128xf32>
    %c0_12 = arith.constant 0 : index
    %c0_13 = arith.constant 0 : index
    %25 = vector.load %arg5[%c0_12, %c0_13] : memref<8x128xf32, #tpu.memory_space<vmem>>, vector<8x128xf32>
    tpu.vector_store %arg5[%c0_12, %c0_13], %24 {strides = array<i32>} : memref<8x128xf32, #tpu.memory_space<vmem>>, vector<8x128xf32>,
    return
  }
  func.func @transform_0(%arg0: i32) -> (i32, i32) {
    %c0_i32 = arith.constant 0 : i32
    %c0_i32_0 = arith.constant 0 : i32
    return %arg0, %c0_i32 : i32, i32
  }
  func.func @transform_1(%arg0: i32) -> (i32, i32) {
    %c0_i32 = arith.constant 0 : i32
    %c0_i32_0 = arith.constant 0 : i32
    %c0_i32_1 = arith.constant 0 : i32
    return %c0_i32, %c0_i32_0 : i32, i32
  }
  func.func @transform_2(%arg0: i32) -> (i32, i32) {
    %c0_i32 = arith.constant 0 : i32
    %c0_i32_0 = arith.constant 0 : i32
    %c0_i32_1 = arith.constant 0 : i32
    return %c0_i32, %c0_i32_0 : i32, i32
  }
  func.func @transform_3(%arg0: i32) -> (i32, i32) {
    %c0_i32 = arith.constant 0 : i32
    %c0_i32_0 = arith.constant 0 : i32
    %c0_i32_1 = arith.constant 0 : i32
    return %c0_i32, %c0_i32_0 : i32, i32
  }
  func.func @transform_4(%arg0: i32) -> (i32, i32) {
    %c0_i32 = arith.constant 0 : i32
    %c0_i32_0 = arith.constant 0 : i32
    return %arg0, %c0_i32 : i32, i32
  }
}

</mosaic_0001>

<llo_original>
// kernel: tpu_custom_call.1
$region0: #{tpu_custom_call.1}
  #allocation0 [shape = 'u32[]', space=smem, size = 0x4, offset = 0x4, fixed_abs, tag = 'smem constant byte address 0x4 - core index']
  #allocation1 [shape = 'u32[144,128]{1,0:T(1,128)}', space=vmem, size = 0x12000, scoped, tag = 'internal scratch']
  %s0 = inlined_call_operand.hbm [shape: f32[8,128], index: 0, kind: input, shape index: {}]
  %s1 = inlined_call_operand.hbm [shape: f32[128,128], index: 1, kind: input, shape index: {}]
  %s2 = inlined_call_operand.vmem [shape: f32[1,128], index: 2, kind: input, shape index: {}]
  %s3 = inlined_call_operand.vmem [shape: f32[1,128], index: 3, kind: input, shape index: {}]
  %s4 = inlined_call_operand.hbm [shape: f32[8,128], index: 4, kind: output, shape index: {}]
  %s5 = sld [smem:[#allocation0]]
  $region34: #{tpu_custom_call.1} parent=0
    _
  %s7 = ssub.s32 1, %s5
  %s8 = scalar_select 0, %s7, %s5
  $region1: #{tpu_custom_call.1} parent=0
    #allocation2 [shape = 'u8[4096]{0}', space=vmem, size = 0x1000, scoped, tag = 'input window, operand 0, single buffered']
    #allocation3 [shape = 's32[1]{0}', space=sflag, size = 0x4, scoped, tag = 'scoped memory for tpu_custom_call.1']
    #allocation4 [shape = 's32[1]{0}', space=sflag, size = 0x4, scoped, tag = 'scoped memory for tpu_custom_call.1']
    #allocation5 [shape = 'u8[65536]{0}', space=vmem, size = 0x10000, scoped, tag = 'input window, operand 1, single buffered']
    #allocation6 [shape = 's32[1]{0}', space=sflag, size = 0x4, scoped, tag = 'scoped memory for tpu_custom_call.1']
    #allocation7 [shape = 'u8[4096]{0}', space=vmem, size = 0x1000, scoped, tag = 'output window, operand 0, single buffered']
    %9 = vsyncpa [#allocation3], 0
    %10 = vsyncpa [#allocation6], 0
    %11 = vsyncpa [#allocation4], 0
    // Predicated region
    $region2: #{tpu_custom_call.1} parent=1 // pred_check
      _
    $region3: #{tpu_custom_call.1} parent=1 // pred_check_branch
      %13 = sbr.rel (0) target = $region5
    $region4: #{tpu_custom_call.1} parent=1 // pred_region
      %s15 = ssub.s32 128, 128
      %16 = vsyncadd [#allocation3], %s15
      %s18 = sshll.u32 [#allocation2], 4
      %s19 = int_to_ptr.vmem [resolvable:$true] %s18
      %21 = dma.hbm_to_vmem [thread:$0]  %s0, 128, %s19, [#allocation3]
    $region5: #{tpu_custom_call.1} parent=1 // pred_fallthru
      _
    // Predicated region
    $region6: #{tpu_custom_call.1} parent=1 // pred_check
      _
    $region7: #{tpu_custom_call.1} parent=1 // pred_check_branch
      %23 = sbr.rel (0) target = $region9
    $region8: #{tpu_custom_call.1} parent=1 // pred_region
      %s25 = ssub.s32 2048, 2048
      %26 = vsyncadd [#allocation6], %s25
      %s27 = sshll.u32 [#allocation5], 4
      %s28 = int_to_ptr.vmem [resolvable:$true] %s27
      %33 = dma.hbm_to_vmem [thread:$0]  %s1, 2048, %s28, [#allocation6], 128, 128, 8
    $region9: #{tpu_custom_call.1} parent=1 // pred_fallthru
      _
    // Predicated region
    $region10: #{tpu_custom_call.1} parent=1 // pred_check
      _
    $region11: #{tpu_custom_call.1} parent=1 // pred_check_branch
      %35 = sbr.rel (0) target = $region13
    $region12: #{tpu_custom_call.1} parent=1 // pred_region
      _
    $region13: #{tpu_custom_call.1} parent=1 // pred_fallthru
      _
    // Predicated region
    $region14: #{tpu_custom_call.1} parent=1 // pred_check
      _
    $region15: #{tpu_custom_call.1} parent=1 // pred_check_branch
      %37 = sbr.rel (0) target = $region17
    $region16: #{tpu_custom_call.1} parent=1 // pred_region
      _
    $region17: #{tpu_custom_call.1} parent=1 // pred_fallthru
      _
    // Predicated region
    $region18: #{tpu_custom_call.1} parent=1 // pred_check
      _
    $region19: #{tpu_custom_call.1} parent=1 // pred_check_branch
      %39 = sbr.rel (0) target = $region21
    $region20: #{tpu_custom_call.1} parent=1 // pred_region
      %40 = dma.done [#allocation3], 128
    $region21: #{tpu_custom_call.1} parent=1 // pred_fallthru
      _
    // Predicated region
    $region22: #{tpu_custom_call.1} parent=1 // pred_check
      _
    $region23: #{tpu_custom_call.1} parent=1 // pred_check_branch
      %42 = sbr.rel (0) target = $region25
    $region24: #{tpu_custom_call.1} parent=1 // pred_region
      %43 = dma.done [#allocation6], 2048
    $region25: #{tpu_custom_call.1} parent=1 // pred_fallthru
      _
    %v44 = vld [vmem:[#allocation2] sm:$0xff]
    %v45 = vld [vmem:[#allocation5] sm:$0xff]
    %v46 = vld [vmem:[#allocation5 + $0x8] sm:$0xff]
    %v47 = vld [vmem:[#allocation5 + $0x10] sm:$0xff]
    %v48 = vld [vmem:[#allocation5 + $0x18] sm:$0xff]
    %v49 = vld [vmem:[#allocation5 + $0x20] sm:$0xff]
    %v50 = vld [vmem:[#allocation5 + $0x28] sm:$0xff]
    %v51 = vld [vmem:[#allocation5 + $0x30] sm:$0xff]
    %v52 = vld [vmem:[#allocation5 + $0x38] sm:$0xff]
    %v53 = vld [vmem:[#allocation5 + $0x40] sm:$0xff]
    %v54 = vld [vmem:[#allocation5 + $0x48] sm:$0xff]
    %v55 = vld [vmem:[#allocation5 + $0x50] sm:$0xff]
    %v56 = vld [vmem:[#allocation5 + $0x58] sm:$0xff]
    %v57 = vld [vmem:[#allocation5 + $0x60] sm:$0xff]
    %v58 = vld [vmem:[#allocation5 + $0x68] sm:$0xff]
    %v59 = vld [vmem:[#allocation5 + $0x70] sm:$0xff]
    %v60 = vld [vmem:[#allocation5 + $0x78] sm:$0xff]
    %61 = vmatprep.subr.mxu0 0.0
    %62 = vmatpush1.msra.mxu0 %v45
    %63 = vmatprep.subr.mxu0 0.0
    %64 = vmatpush1.msra.mxu0 %v46
    %65 = vmatprep.subr.mxu0 0.0
    %66 = vmatpush1.msra.mxu0 %v47
    %67 = vmatprep.subr.mxu0 0.0
    %68 = vmatpush1.msra.mxu0 %v48
    %69 = vmatprep.subr.mxu0 0.0
    %70 = vmatpush1.msra.mxu0 %v49
    %71 = vmatprep.subr.mxu0 0.0
    %72 = vmatpush1.msra.mxu0 %v50
    %73 = vmatprep.subr.mxu0 0.0
    %74 = vmatpush1.msra.mxu0 %v51
    %75 = vmatprep.subr.mxu0 0.0
    %76 = vmatpush1.msra.mxu0 %v52
    %77 = vmatprep.subr.mxu0 0.0
    %78 = vmatpush1.msra.mxu0 %v53
    %79 = vmatprep.subr.mxu0 0.0
    %80 = vmatpush1.msra.mxu0 %v54
    %81 = vmatprep.subr.mxu0 0.0
    %82 = vmatpush1.msra.mxu0 %v55
    %83 = vmatprep.subr.mxu0 0.0
    %84 = vmatpush1.msra.mxu0 %v56
    %85 = vmatprep.subr.mxu0 0.0
    %86 = vmatpush1.msra.mxu0 %v57
    %87 = vmatprep.subr.mxu0 0.0
    %88 = vmatpush1.msra.mxu0 %v58
    %89 = vmatprep.subr.mxu0 0.0
    %90 = vmatpush1.msra.mxu0 %v59
    %91 = vmatprep.subr.mxu0 0.0
    %92 = vmatpush1.msra.mxu0 %v60
    %93 = vmatprep.subr.mxu0 0.0
    %94 = vmatpush1.msra.mxu0 0.0
    %95 = vmatprep.subr.mxu0 0.0
    %96 = vmatpush1.msra.mxu0 0.0
    %97 = vmatprep.subr.mxu0 0.0
    %98 = vmatpush1.msra.mxu0 0.0
    %99 = vmatprep.subr.mxu0 0.0
    %100 = vmatpush1.msra.mxu0 0.0
    %101 = vmatprep.subr.mxu0 0.0
    %102 = vmatpush1.msra.mxu0 0.0
    %103 = vmatprep.subr.mxu0 0.0
    %104 = vmatpush1.msra.mxu0 0.0
    %105 = vmatprep.subr.mxu0 0.0
    %106 = vmatpush1.msra.mxu0 0.0
    %107 = vmatprep.subr.mxu0 0.0
    %108 = vmatpush1.msra.mxu0 0.0
    %109 = vmatprep.subr.mxu0 0.0
    %110 = vmatpush1.msra.mxu0 0.0
    %111 = vmatprep.subr.mxu0 0.0
    %112 = vmatpush1.msra.mxu0 0.0
    %113 = vmatprep.subr.mxu0 0.0
    %114 = vmatpush1.msra.mxu0 0.0
    %115 = vmatprep.subr.mxu0 0.0
    %116 = vmatpush1.msra.mxu0 0.0
    %117 = vmatprep.subr.mxu0 0.0
    %118 = vmatpush1.msra.mxu0 0.0
    %119 = vmatprep.subr.mxu0 0.0
    %120 = vmatpush1.msra.mxu0 0.0
    %121 = vmatprep.subr.mxu0 0.0
    %122 = vmatpush1.msra.mxu0 0.0
    %123 = vmatprep.subr.mxu0 0.0
    %124 = vmatpush1.msra.mxu0 0.0
    %125 = vmatprep.mubr.f32.mxu0 0.0
    %126 = vmatmul.mubr.f32.gmra.mrb[0].mxu0 %v44
    %v127 = vpop.f32.mrb[0].mxu0
    %v128 = vadd.f32 0.0, %v127
    %v129 = vpop.f32.mrb[0].mxu0
    %130 = vdwg.mxu0
    %v131 = vmul.f32 %v44, %v44
    %132 = vmatprep.subr.mxu0 0.0
    %133 = vmatpush1.msra.mxu0 %v45
    %134 = vmatprep.subr.mxu0 0.0
    %135 = vmatpush1.msra.mxu0 %v46
    %136 = vmatprep.subr.mxu0 0.0
    %137 = vmatpush1.msra.mxu0 %v47
    %138 = vmatprep.subr.mxu0 0.0
    %139 = vmatpush1.msra.mxu0 %v48
    %140 = vmatprep.subr.mxu0 0.0
    %141 = vmatpush1.msra.mxu0 %v49
    %142 = vmatprep.subr.mxu0 0.0
    %143 = vmatpush1.msra.mxu0 %v50
    %144 = vmatprep.subr.mxu0 0.0
    %145 = vmatpush1.msra.mxu0 %v51
    %146 = vmatprep.subr.mxu0 0.0
    %147 = vmatpush1.msra.mxu0 %v52
    %148 = vmatprep.subr.mxu0 0.0
    %149 = vmatpush1.msra.mxu0 %v53
    %150 = vmatprep.subr.mxu0 0.0
    %151 = vmatpush1.msra.mxu0 %v54
    %152 = vmatprep.subr.mxu0 0.0
    %153 = vmatpush1.msra.mxu0 %v55
    %154 = vmatprep.subr.mxu0 0.0
    %155 = vmatpush1.msra.mxu0 %v56
    %156 = vmatprep.subr.mxu0 0.0
    %157 = vmatpush1.msra.mxu0 %v57
    %158 = vmatprep.subr.mxu0 0.0
    %159 = vmatpush1.msra.mxu0 %v58
    %160 = vmatprep.subr.mxu0 0.0
    %161 = vmatpush1.msra.mxu0 %v59
    %162 = vmatprep.subr.mxu0 0.0
    %163 = vmatpush1.msra.mxu0 %v60
    %164 = vmatprep.subr.mxu0 0.0
    %165 = vmatpush1.msra.mxu0 0.0
    %166 = vmatprep.subr.mxu0 0.0
    %167 = vmatpush1.msra.mxu0 0.0
    %168 = vmatprep.subr.mxu0 0.0
    %169 = vmatpush1.msra.mxu0 0.0
    %170 = vmatprep.subr.mxu0 0.0
    %171 = vmatpush1.msra.mxu0 0.0
    %172 = vmatprep.subr.mxu0 0.0
    %173 = vmatpush1.msra.mxu0 0.0
    %174 = vmatprep.subr.mxu0 0.0
    %175 = vmatpush1.msra.mxu0 0.0
    %176 = vmatprep.subr.mxu0 0.0
    %177 = vmatpush1.msra.mxu0 0.0
    %178 = vmatprep.subr.mxu0 0.0
    %179 = vmatpush1.msra.mxu0 0.0
    %180 = vmatprep.subr.mxu0 0.0
    %181 = vmatpush1.msra.mxu0 0.0
    %182 = vmatprep.subr.mxu0 0.0
    %183 = vmatpush1.msra.mxu0 0.0
    %184 = vmatprep.subr.mxu0 0.0
    %185 = vmatpush1.msra.mxu0 0.0
    %186 = vmatprep.subr.mxu0 0.0
    %187 = vmatpush1.msra.mxu0 0.0
    %188 = vmatprep.subr.mxu0 0.0
    %189 = vmatpush1.msra.mxu0 0.0
    %190 = vmatprep.subr.mxu0 0.0
    %191 = vmatpush1.msra.mxu0 0.0
    %192 = vmatprep.subr.mxu0 0.0
    %193 = vmatpush1.msra.mxu0 0.0
    %194 = vmatprep.subr.mxu0 0.0
    %195 = vmatpush1.msra.mxu0 0.0
    %196 = vmatprep.mubr.f32.mxu0 0.0
    %197 = vmatmul.mubr.f32.gmra.mrb[0].mxu0 %v131
    %v198 = vpop.f32.mrb[0].mxu0
    %v199 = vadd.f32 0.0, %v198
    %v200 = vpop.f32.mrb[0].mxu0
    %201 = vdwg.mxu0
    %v202 = vmul.f32 %v128, 0.03125
    %v203 = vmul.f32 %v128, %v202
    %v204 = vsub.f32 %v199, %v203
    %v205 = vmul.f32 %v204, 0.032258064
    %v206 = vmax.f32 %v205, 0.0
    %v207 = vrsqrt.pop %v206
    %v208 = vmul.f32 %v206, %v207
    %vm209 = vcmp.eq.f32.partialorder %v206, inf
    %v210 = vsel %vm209, %v206, %v208
    %vm211 = vcmp.eq.f32.partialorder %v206, 0.0
    %v212 = vand.u32 %v206, 2147483648
    %v213 = vsel %vm211, %v212, %v210
    %v214 = vadd.f32 %v213, 1e-06
    %v215 = vrcp.pop %v214
    %v216 = vld [vmem:[%s2] sm:$0x1]
    %v217 = vsub.f32 %v44, %v202
    %v218 = vmul.f32 %v217, %v215
    %v220 = vlaneseq
    %v221 = vshrl.u32 %v220, 7
    %v222 = vsub.s32 0, %v221
    %v223 = vrot.slane %v216, %v222
    %v225 = vmul.f32 %v223, %v218
    %v226 = vld [vmem:[%s3] sm:$0x1]
    %v228 = vlaneseq
    %v229 = vshrl.u32 %v228, 7
    %v230 = vsub.s32 0, %v229
    %v231 = vrot.slane %v226, %v230
    %v233 = vadd.f32 %v225, %v231
    %234 = vst [vmem:[#allocation7] sm:$0xff] %v233
    // Predicated region
    $region26: #{tpu_custom_call.1} parent=1 // pred_check
      _
    $region27: #{tpu_custom_call.1} parent=1 // pred_check_branch
      %236 = sbr.rel (0) target = $region29
    $region28: #{tpu_custom_call.1} parent=1 // pred_region
      %s238 = ssub.s32 128, 128
      %239 = vsyncadd [#allocation4], %s238
      %s241 = sshll.u32 [#allocation7], 4
      %s242 = int_to_ptr.vmem [resolvable:$true] %s241
      %244 = dma.vmem_to_hbm [thread:$0]  %s242, 128, %s4, [#allocation4]
    $region29: #{tpu_custom_call.1} parent=1 // pred_fallthru
      _
    // Predicated region
    $region30: #{tpu_custom_call.1} parent=1 // pred_check
      _
    $region31: #{tpu_custom_call.1} parent=1 // pred_check_branch
      %246 = sbr.rel (0) target = $region33
    $region32: #{tpu_custom_call.1} parent=1 // pred_region
      %247 = dma.done [#allocation4], 128
    $region33: #{tpu_custom_call.1} parent=1 // pred_fallthru
      _
    %248 = vsyncpa [#allocation3], 1
    %249 = vsyncpa [#allocation6], 1
    %250 = vsyncpa [#allocation4], 1

</llo_original>
